<compile_context>
chip_gen: v7x
topology: tpu7x:2x2x1
jax: 0.10.0
libtpu: 0.0.40
codegen_flags: <defaults>
</compile_context>

<pallas_src>
import jax
import jax.numpy as jnp
from jax.experimental import pallas as pl
from jax.experimental.pallas import tpu as pltpu


def _make_stats_kernel(cout, cin):
    def stats_kernel(w_ref, x_ref, sum_ref, sq_ref):
        # w_ref: SMEM (cout, cin); x_ref: VMEM (cin, t_hw)
        # sum_ref / sq_ref: VMEM (cout, t_hw), resident across the hw grid axis.
        @pl.when(pl.program_id(1) == 0)
        def _():
            sum_ref[...] = jnp.zeros_like(sum_ref)
            sq_ref[...] = jnp.zeros_like(sq_ref)

        x_rows = [x_ref[ci:ci + 1, :] for ci in range(cin)]
        for co in range(cout):
            y = w_ref[co, 0] * x_rows[0]
            for ci in range(1, cin):
                y = y + w_ref[co, ci] * x_rows[ci]
            sum_ref[co:co + 1, :] += y
            sq_ref[co:co + 1, :] += y * y

    return stats_kernel


def _make_bn_relu_kernel(cout, cin):
    def bn_relu_kernel(ws_ref, shift_ref, x_ref, o_ref):
        # ws_ref holds the BN-scale-folded conv weights: ws[co,ci] = w[co,ci]*scale[co].
        # So output = ReLU(sum_ci ws[co,ci] * x[ci] + shift[co]).
        x_rows = [x_ref[ci:ci + 1, :] for ci in range(cin)]
        for co in range(cout):
            y = ws_ref[co, 0] * x_rows[0]
            for ci in range(1, cin):
                y = y + ws_ref[co, ci] * x_rows[ci]
            o_ref[co:co + 1, :] = jnp.maximum(y + shift_ref[co], 0.0)

    return bn_relu_kernel


def _pick_hw_tile(hw, cap=8192):
    """Largest lane-dense tile (multiple of 128) dividing hw, capped at `cap`."""
    if hw <= cap or hw % 128 != 0:
        return hw
    t = (cap // 128) * 128
    while t >= 128:
        if hw % t == 0:
            return t
        t -= 128
    return hw


def node2_forward(x_nchw, conv_w, conv_b, gamma, beta, eps=1e-5):
    """x_nchw: (N, Cin, H, W) float32. Returns (N, Cout, H, W) float32."""
    N, Cin, H, W = x_nchw.shape
    Cout = conv_w.shape[0]
    HW = H * W
    M = N * HW

    x_v = x_nchw.reshape(N, Cin, HW)                       # free view (contiguous)
    w_mat = conv_w.reshape(Cout, Cin).astype(jnp.float32)  # (Cout, Cin)
    del conv_b  # cancels exactly against BN's batch-mean subtraction

    t_hw = _pick_hw_tile(HW)
    n_hw = HW // t_hw
    grid = (N, n_hw)

    # ---- pass 1: per-(n, channel) lane-wise partial sum / sumsq of conv(x) ----
    sum_p, sq_p = pl.pallas_call(
        _make_stats_kernel(Cout, Cin),
        out_shape=(
            jax.ShapeDtypeStruct((N, Cout, t_hw), jnp.float32),
            jax.ShapeDtypeStruct((N, Cout, t_hw), jnp.float32),
        ),
        grid_spec=pltpu.PrefetchScalarGridSpec(
            num_scalar_prefetch=0,
            grid=grid,
            in_specs=[
                pl.BlockSpec(memory_space=pltpu.MemorySpace.SMEM),        # w
                pl.BlockSpec((None, Cin, t_hw), lambda n, j: (n, 0, j)),  # x
            ],
            out_specs=[
                pl.BlockSpec((None, Cout, t_hw), lambda n, j: (n, 0, 0)),
                pl.BlockSpec((None, Cout, t_hw), lambda n, j: (n, 0, 0)),
            ],
        ),
        compiler_params=pltpu.CompilerParams(
            dimension_semantics=("parallel", "arbitrary")),
    )(w_mat, x_v)

    # ---- tiny per-channel epilogue in plain JAX (train-mode batch stats,
    #      biased variance, as PyTorch uses for normalization in train mode) ----
    ch_sum = jnp.sum(sum_p, axis=(0, 2))                 # (Cout,)
    ch_sq = jnp.sum(sq_p, axis=(0, 2))                   # (Cout,)
    mean = ch_sum / M
    var = jnp.maximum(ch_sq / M - mean * mean, 0.0)      # guard tiny negative var
    inv_std = jax.lax.rsqrt(var + eps)
    scale = (gamma * inv_std).astype(jnp.float32)        # (Cout,)
    shift = (beta - mean * scale).astype(jnp.float32)    # (Cout,)
    w_scaled = (w_mat * scale[:, None]).astype(jnp.float32)   # fold BN scale into conv
    # TODO(synk): PyTorch BatchNorm2d also updates running_mean/running_var in
    # train mode (momentum=0.01); only the forward output is reproduced here.

    # ---- pass 2: recompute conv with folded scale, add shift, ReLU, store -----
    out_v = pl.pallas_call(
        _make_bn_relu_kernel(Cout, Cin),
        out_shape=jax.ShapeDtypeStruct((N, Cout, HW), jnp.float32),
        grid_spec=pltpu.PrefetchScalarGridSpec(
            num_scalar_prefetch=0,
            grid=grid,
            in_specs=[
                pl.BlockSpec(memory_space=pltpu.MemorySpace.SMEM),        # w_scaled
                pl.BlockSpec(memory_space=pltpu.MemorySpace.SMEM),        # shift
                pl.BlockSpec((None, Cin, t_hw), lambda n, j: (n, 0, j)),  # x
            ],
            out_specs=pl.BlockSpec((None, Cout, t_hw), lambda n, j: (n, 0, j)),
        ),
        compiler_params=pltpu.CompilerParams(
            dimension_semantics=("parallel", "parallel")),
    )(w_scaled, shift, x_v)

    return out_v.reshape(N, Cout, H, W)


if __name__ == "__main__":
    # Defaults of Node_2: cin=3, cout=3
    N, Cin, Cout, H, W = 2, 3, 3, 16, 16

    key = jax.random.PRNGKey(0)
    kx, kw, kb = jax.random.split(key, 3)

    x = jax.random.normal(kx, (N, Cin, H, W), dtype=jnp.float32)
    conv_w = jax.random.normal(kw, (Cout, Cin, 1, 1), dtype=jnp.float32) * 0.1
    conv_b = jax.random.normal(kb, (Cout,), dtype=jnp.float32) * 0.1
    gamma = jnp.ones((Cout,), dtype=jnp.float32)   # BN weight init
    beta = jnp.zeros((Cout,), dtype=jnp.float32)   # BN bias init

    out = node2_forward(x, conv_w, conv_b, gamma, beta)
    jax.block_until_ready(out)

    assert out.shape == (N, Cout, H, W)
    assert out.dtype == jnp.float32

    # Pure-JAX reference of the PyTorch forward: Conv1x1(+bias) -> BN(train) -> ReLU
    y_ref = jnp.einsum("oi,nihw->nohw", conv_w.reshape(Cout, Cin), x) \
        + conv_b.reshape(1, Cout, 1, 1)
    m_ref = jnp.mean(y_ref, axis=(0, 2, 3), keepdims=True)
    v_ref = jnp.var(y_ref, axis=(0, 2, 3), keepdims=True)   # biased, as BN normalization uses
    ref = jnp.maximum(
        (y_ref - m_ref) * jax.lax.rsqrt(v_ref + 1e-5) * gamma.reshape(1, Cout, 1, 1)
        + beta.reshape(1, Cout, 1, 1), 0.0)
    assert jnp.allclose(out, ref, atol=1e-2, rtol=1e-2)

    print("KERNEL_OK")
</pallas_src>

<mosaic_0001>
module attributes {stable_mosaic.version = 11 : i64} {
  func.func @stats_kernel(%arg0: i32, %arg1: i32, %arg2: memref<3x3xf32, #tpu.memory_space<smem>>, %arg3: memref<1x3x256xf32, #tpu.memory_space<vmem>>, %arg4: memref<1x3x256xf32, #tpu.memory_space<vmem>>, %arg5: memref<1x3x256xf32, #tpu.memory_space<vmem>>) attributes {dimension_semantics = [#tpu.dimension_semantics<parallel>, #tpu.dimension_semantics<arbitrary>], iteration_bounds = array<i64: 2, 1>, scalar_prefetch = 0 : i64, scratch_operands = 0 : i64, tpu.core_type = #tpu.core_type<tc>, window_params = [{transform_indices = @transform_0, window_bounds = array<i64: 3, 3>}, {transform_indices = @transform_1, window_bounds = array<i64: 1, 3, 256>}, {transform_indices = @transform_2, window_bounds = array<i64: 1, 3, 256>}, {transform_indices = @transform_3, window_bounds = array<i64: 1, 3, 256>}]} {
    %c0_i32 = arith.constant 0 : i32
    %0 = arith.cmpi eq, %arg1, %c0_i32 : i32
    %1 = arith.extui %0 : i1 to i32
    %c0_i32_0 = arith.constant 0 : i32
    %2 = arith.cmpi ne, %1, %c0_i32_0 : i32
    scf.if %2 {
      %cst = arith.constant 0.000000e+00 : f32
      %81 = vector.broadcast %cst : f32 to vector<3x256xf32>
      %c0_61 = arith.constant 0 : index
      %c0_62 = arith.constant 0 : index
      %c0_63 = arith.constant 0 : index
      %82 = vector.load %arg4[%c0_61, %c0_62, %c0_63] : memref<1x3x256xf32, #tpu.memory_space<vmem>>, vector<1x3x256xf32>
      %83 = vector.shape_cast %82 : vector<1x3x256xf32> to vector<3x256xf32>
      %84 = vector.shape_cast %81 : vector<3x256xf32> to vector<1x3x256xf32>
      tpu.vector_store %arg4[%c0_61, %c0_62, %c0_63], %84 {strides = array<i32>} : memref<1x3x256xf32, #tpu.memory_space<vmem>>, vector<1x3x256xf32>,
      %cst_64 = arith.constant 0.000000e+00 : f32
      %85 = vector.broadcast %cst_64 : f32 to vector<3x256xf32>
      %c0_65 = arith.constant 0 : index
      %c0_66 = arith.constant 0 : index
      %c0_67 = arith.constant 0 : index
      %86 = vector.load %arg5[%c0_65, %c0_66, %c0_67] : memref<1x3x256xf32, #tpu.memory_space<vmem>>, vector<1x3x256xf32>
      %87 = vector.shape_cast %86 : vector<1x3x256xf32> to vector<3x256xf32>
      %88 = vector.shape_cast %85 : vector<3x256xf32> to vector<1x3x256xf32>
      tpu.vector_store %arg5[%c0_65, %c0_66, %c0_67], %88 {strides = array<i32>} : memref<1x3x256xf32, #tpu.memory_space<vmem>>, vector<1x3x256xf32>,
    } else {
    }
    %c0 = arith.constant 0 : index
    %c0_1 = arith.constant 0 : index
    %c0_2 = arith.constant 0 : index
    %3 = vector.load %arg3[%c0, %c0_1, %c0_2] : memref<1x3x256xf32, #tpu.memory_space<vmem>>, vector<1x1x256xf32>
    %4 = vector.shape_cast %3 : vector<1x1x256xf32> to vector<1x256xf32>
    %c0_3 = arith.constant 0 : index
    %c1 = arith.constant 1 : index
    %c0_4 = arith.constant 0 : index
    %5 = vector.load %arg3[%c0_3, %c1, %c0_4] : memref<1x3x256xf32, #tpu.memory_space<vmem>>, vector<1x1x256xf32>
    %6 = vector.shape_cast %5 : vector<1x1x256xf32> to vector<1x256xf32>
    %c0_5 = arith.constant 0 : index
    %c2 = arith.constant 2 : index
    %c0_6 = arith.constant 0 : index
    %7 = vector.load %arg3[%c0_5, %c2, %c0_6] : memref<1x3x256xf32, #tpu.memory_space<vmem>>, vector<1x1x256xf32>
    %8 = vector.shape_cast %7 : vector<1x1x256xf32> to vector<1x256xf32>
    %c0_7 = arith.constant 0 : index
    %c0_8 = arith.constant 0 : index
    %9 = memref.load %arg2[%c0_7, %c0_8] : memref<3x3xf32, #tpu.memory_space<smem>>
    %10 = vector.broadcast %9 : f32 to vector<1x256xf32>
    %11 = arith.mulf %10, %4 : vector<1x256xf32>
    %c0_9 = arith.constant 0 : index
    %c1_10 = arith.constant 1 : index
    %12 = memref.load %arg2[%c0_9, %c1_10] : memref<3x3xf32, #tpu.memory_space<smem>>
    %13 = vector.broadcast %12 : f32 to vector<1x256xf32>
    %14 = arith.mulf %13, %6 : vector<1x256xf32>
    %15 = arith.addf %11, %14 : vector<1x256xf32>
    %c0_11 = arith.constant 0 : index
    %c2_12 = arith.constant 2 : index
    %16 = memref.load %arg2[%c0_11, %c2_12] : memref<3x3xf32, #tpu.memory_space<smem>>
    %17 = vector.broadcast %16 : f32 to vector<1x256xf32>
    %18 = arith.mulf %17, %8 : vector<1x256xf32>
    %19 = arith.addf %15, %18 : vector<1x256xf32>
    %c0_13 = arith.constant 0 : index
    %c0_14 = arith.constant 0 : index
    %c0_15 = arith.constant 0 : index
    %20 = vector.load %arg4[%c0_13, %c0_14, %c0_15] : memref<1x3x256xf32, #tpu.memory_space<vmem>>, vector<1x1x256xf32>
    %21 = vector.shape_cast %20 : vector<1x1x256xf32> to vector<1x256xf32>
    %22 = arith.addf %21, %19 : vector<1x256xf32>
    %c0_16 = arith.constant 0 : index
    %c0_17 = arith.constant 0 : index
    %c0_18 = arith.constant 0 : index
    %23 = vector.load %arg4[%c0_16, %c0_17, %c0_18] : memref<1x3x256xf32, #tpu.memory_space<vmem>>, vector<1x1x256xf32>
    %24 = vector.shape_cast %23 : vector<1x1x256xf32> to vector<1x256xf32>
    %25 = vector.shape_cast %22 : vector<1x256xf32> to vector<1x1x256xf32>
    tpu.vector_store %arg4[%c0_16, %c0_17, %c0_18], %25 {strides = array<i32>} : memref<1x3x256xf32, #tpu.memory_space<vmem>>, vector<1x1x256xf32>,
    %c0_19 = arith.constant 0 : index
    %c0_20 = arith.constant 0 : index
    %c0_21 = arith.constant 0 : index
    %26 = vector.load %arg5[%c0_19, %c0_20, %c0_21] : memref<1x3x256xf32, #tpu.memory_space<vmem>>, vector<1x1x256xf32>
    %27 = vector.shape_cast %26 : vector<1x1x256xf32> to vector<1x256xf32>
    %28 = arith.mulf %19, %19 : vector<1x256xf32>
    %29 = arith.addf %27, %28 : vector<1x256xf32>
    %c0_22 = arith.constant 0 : index
    %c0_23 = arith.constant 0 : index
    %c0_24 = arith.constant 0 : index
    %30 = vector.load %arg5[%c0_22, %c0_23, %c0_24] : memref<1x3x256xf32, #tpu.memory_space<vmem>>, vector<1x1x256xf32>
    %31 = vector.shape_cast %30 : vector<1x1x256xf32> to vector<1x256xf32>
    %32 = vector.shape_cast %29 : vector<1x256xf32> to vector<1x1x256xf32>
    tpu.vector_store %arg5[%c0_22, %c0_23, %c0_24], %32 {strides = array<i32>} : memref<1x3x256xf32, #tpu.memory_space<vmem>>, vector<1x1x256xf32>,
    %c1_25 = arith.constant 1 : index
    %c0_26 = arith.constant 0 : index
    %33 = memref.load %arg2[%c1_25, %c0_26] : memref<3x3xf32, #tpu.memory_space<smem>>
    %34 = vector.broadcast %33 : f32 to vector<1x256xf32>
    %35 = arith.mulf %34, %4 : vector<1x256xf32>
    %c1_27 = arith.constant 1 : index
    %c1_28 = arith.constant 1 : index
    %36 = memref.load %arg2[%c1_27, %c1_28] : memref<3x3xf32, #tpu.memory_space<smem>>
    %37 = vector.broadcast %36 : f32 to vector<1x256xf32>
    %38 = arith.mulf %37, %6 : vector<1x256xf32>
    %39 = arith.addf %35, %38 : vector<1x256xf32>
    %c1_29 = arith.constant 1 : index
    %c2_30 = arith.constant 2 : index
    %40 = memref.load %arg2[%c1_29, %c2_30] : memref<3x3xf32, #tpu.memory_space<smem>>
    %41 = vector.broadcast %40 : f32 to vector<1x256xf32>
    %42 = arith.mulf %41, %8 : vector<1x256xf32>
    %43 = arith.addf %39, %42 : vector<1x256xf32>
    %c0_31 = arith.constant 0 : index
    %c1_32 = arith.constant 1 : index
    %c0_33 = arith.constant 0 : index
    %44 = vector.load %arg4[%c0_31, %c1_32, %c0_33] : memref<1x3x256xf32, #tpu.memory_space<vmem>>, vector<1x1x256xf32>
    %45 = vector.shape_cast %44 : vector<1x1x256xf32> to vector<1x256xf32>
    %46 = arith.addf %45, %43 : vector<1x256xf32>
    %c0_34 = arith.constant 0 : index
    %c1_35 = arith.constant 1 : index
    %c0_36 = arith.constant 0 : index
    %47 = vector.load %arg4[%c0_34, %c1_35, %c0_36] : memref<1x3x256xf32, #tpu.memory_space<vmem>>, vector<1x1x256xf32>
    %48 = vector.shape_cast %47 : vector<1x1x256xf32> to vector<1x256xf32>
    %49 = vector.shape_cast %46 : vector<1x256xf32> to vector<1x1x256xf32>
    tpu.vector_store %arg4[%c0_34, %c1_35, %c0_36], %49 {strides = array<i32>} : memref<1x3x256xf32, #tpu.memory_space<vmem>>, vector<1x1x256xf32>,
    %c0_37 = arith.constant 0 : index
    %c1_38 = arith.constant 1 : index
    %c0_39 = arith.constant 0 : index
    %50 = vector.load %arg5[%c0_37, %c1_38, %c0_39] : memref<1x3x256xf32, #tpu.memory_space<vmem>>, vector<1x1x256xf32>
    %51 = vector.shape_cast %50 : vector<1x1x256xf32> to vector<1x256xf32>
    %52 = arith.mulf %43, %43 : vector<1x256xf32>
    %53 = arith.addf %51, %52 : vector<1x256xf32>
    %c0_40 = arith.constant 0 : index
    %c1_41 = arith.constant 1 : index
    %c0_42 = arith.constant 0 : index
    %54 = vector.load %arg5[%c0_40, %c1_41, %c0_42] : memref<1x3x256xf32, #tpu.memory_space<vmem>>, vector<1x1x256xf32>
    %55 = vector.shape_cast %54 : vector<1x1x256xf32> to vector<1x256xf32>
    %56 = vector.shape_cast %53 : vector<1x256xf32> to vector<1x1x256xf32>
    tpu.vector_store %arg5[%c0_40, %c1_41, %c0_42], %56 {strides = array<i32>} : memref<1x3x256xf32, #tpu.memory_space<vmem>>, vector<1x1x256xf32>,
    %c2_43 = arith.constant 2 : index
    %c0_44 = arith.constant 0 : index
    %57 = memref.load %arg2[%c2_43, %c0_44] : memref<3x3xf32, #tpu.memory_space<smem>>
    %58 = vector.broadcast %57 : f32 to vector<1x256xf32>
    %59 = arith.mulf %58, %4 : vector<1x256xf32>
    %c2_45 = arith.constant 2 : index
    %c1_46 = arith.constant 1 : index
    %60 = memref.load %arg2[%c2_45, %c1_46] : memref<3x3xf32, #tpu.memory_space<smem>>
    %61 = vector.broadcast %60 : f32 to vector<1x256xf32>
    %62 = arith.mulf %61, %6 : vector<1x256xf32>
    %63 = arith.addf %59, %62 : vector<1x256xf32>
    %c2_47 = arith.constant 2 : index
    %c2_48 = arith.constant 2 : index
    %64 = memref.load %arg2[%c2_47, %c2_48] : memref<3x3xf32, #tpu.memory_space<smem>>
    %65 = vector.broadcast %64 : f32 to vector<1x256xf32>
    %66 = arith.mulf %65, %8 : vector<1x256xf32>
    %67 = arith.addf %63, %66 : vector<1x256xf32>
    %c0_49 = arith.constant 0 : index
    %c2_50 = arith.constant 2 : index
    %c0_51 = arith.constant 0 : index
    %68 = vector.load %arg4[%c0_49, %c2_50, %c0_51] : memref<1x3x256xf32, #tpu.memory_space<vmem>>, vector<1x1x256xf32>
    %69 = vector.shape_cast %68 : vector<1x1x256xf32> to vector<1x256xf32>
    %70 = arith.addf %69, %67 : vector<1x256xf32>
    %c0_52 = arith.constant 0 : index
    %c2_53 = arith.constant 2 : index
    %c0_54 = arith.constant 0 : index
    %71 = vector.load %arg4[%c0_52, %c2_53, %c0_54] : memref<1x3x256xf32, #tpu.memory_space<vmem>>, vector<1x1x256xf32>
    %72 = vector.shape_cast %71 : vector<1x1x256xf32> to vector<1x256xf32>
    %73 = vector.shape_cast %70 : vector<1x256xf32> to vector<1x1x256xf32>
    tpu.vector_store %arg4[%c0_52, %c2_53, %c0_54], %73 {strides = array<i32>} : memref<1x3x256xf32, #tpu.memory_space<vmem>>, vector<1x1x256xf32>,
    %c0_55 = arith.constant 0 : index
    %c2_56 = arith.constant 2 : index
    %c0_57 = arith.constant 0 : index
    %74 = vector.load %arg5[%c0_55, %c2_56, %c0_57] : memref<1x3x256xf32, #tpu.memory_space<vmem>>, vector<1x1x256xf32>
    %75 = vector.shape_cast %74 : vector<1x1x256xf32> to vector<1x256xf32>
    %76 = arith.mulf %67, %67 : vector<1x256xf32>
    %77 = arith.addf %75, %76 : vector<1x256xf32>
    %c0_58 = arith.constant 0 : index
    %c2_59 = arith.constant 2 : index
    %c0_60 = arith.constant 0 : index
    %78 = vector.load %arg5[%c0_58, %c2_59, %c0_60] : memref<1x3x256xf32, #tpu.memory_space<vmem>>, vector<1x1x256xf32>
    %79 = vector.shape_cast %78 : vector<1x1x256xf32> to vector<1x256xf32>
    %80 = vector.shape_cast %77 : vector<1x256xf32> to vector<1x1x256xf32>
    tpu.vector_store %arg5[%c0_58, %c2_59, %c0_60], %80 {strides = array<i32>} : memref<1x3x256xf32, #tpu.memory_space<vmem>>, vector<1x1x256xf32>,
    return
  }
  func.func @transform_0(%arg0: i32, %arg1: i32) -> (i32, i32) {
    %c0_i32 = arith.constant 0 : i32
    %c0_i32_0 = arith.constant 0 : i32
    %c0_i32_1 = arith.constant 0 : i32
    return %c0_i32, %c0_i32_0 : i32, i32
  }
  func.func @transform_1(%arg0: i32, %arg1: i32) -> (i32, i32, i32) {
    %c0_i32 = arith.constant 0 : i32
    %c0_i32_0 = arith.constant 0 : i32
    return %arg0, %c0_i32, %arg1 : i32, i32, i32
  }
  func.func @transform_2(%arg0: i32, %arg1: i32) -> (i32, i32, i32) {
    %c0_i32 = arith.constant 0 : i32
    %c0_i32_0 = arith.constant 0 : i32
    %c0_i32_1 = arith.constant 0 : i32
    return %arg0, %c0_i32, %c0_i32_0 : i32, i32, i32
  }
  func.func @transform_3(%arg0: i32, %arg1: i32) -> (i32, i32, i32) {
    %c0_i32 = arith.constant 0 : i32
    %c0_i32_0 = arith.constant 0 : i32
    %c0_i32_1 = arith.constant 0 : i32
    return %arg0, %c0_i32, %c0_i32_0 : i32, i32, i32
  }
}

</mosaic_0001>

<llo_original>
// kernel: tpu_custom_call.1
$region0: #{tpu_custom_call.1}
  #allocation0 [shape = 'u32[]', space=smem, size = 0x4, offset = 0x4, fixed_abs, tag = 'smem constant byte address 0x4 - core index']
  #allocation1 [shape = 'u32[144,128]{1,0:T(1,128)}', space=vmem, size = 0x12000, scoped, tag = 'internal scratch']
  %s0 = inlined_call_operand.vmem [shape: f32[3,3], index: 0, kind: input, shape index: {}]
  %s1 = inlined_call_operand.vmem [shape: f32[2,3,256], index: 1, kind: input, shape index: {}]
  %s2 = inlined_call_operand.vmem [shape: f32[2,3,256], index: 2, kind: output, shape index: {0}]
  %s3 = inlined_call_operand.vmem [shape: f32[2,3,256], index: 3, kind: output, shape index: {1}]
  %4 = xla_tuple %s2, %s3
  %s5 = sld [smem:[#allocation0]]
  $region57: #{tpu_custom_call.1} parent=0
    _
  %s7 = ssub.s32 1, %s5
  %s8 = scalar_select 0, %s7, %s5
  $region1: #{tpu_custom_call.1} parent=0
    #allocation2 [shape = 'u8[2048]{0}', space=smem, size = 0x800, scoped, tag = 'input window, operand 0, single buffered']
    #allocation3 [shape = 's32[2]{0}', space=sflag, size = 0x8, scoped, tag = 'scoped memory for tpu_custom_call.1']
    %9 = vsyncpa [#allocation3], 0
    loop: start=0, step=1, limit=4
    $region2: #{tpu_custom_call.1} parent=1 // loop_pre_header
      _
    $region3: #{tpu_custom_call.1} parent=1 // loop_header
      %s11 = sphi 0, %s15
      %p12 = scmp.ge.s32.totalorder %s11, 4
      %s18 = sphi 0, %s30
      %s19 = sphi 0, %s26
      %s20 = sphi 0, %s18
      %s21 = sphi 0, %s19
      %s22 = sphi 0, %s20
      %s23 = sphi 0, %s21
      %s31 = sphi 0, %s31
      %s33 = sphi 0, %s31
      %s34 = sphi 0, %s33
      %s48 = sphi 0, %s34
      %s56 = sphi 0, %s58
      %s59 = sphi 0, %s56
      %s60 = sphi 0, %s59
      %s76 = sphi 0, %s60
      %s82 = sphi 0, %s84
      %s85 = sphi 0, %s82
      %s86 = sphi 0, %s85
      %s102 = sphi 0, %s86
      %s108 = sphi 0, %s110
      %s111 = sphi 0, %s108
      %s112 = sphi 0, %s111
      %s128 = sphi 0, %s112
    $region4: #{tpu_custom_call.1} parent=1 // loop_header_branch
      %14 = sbr.rel (%p12) target = $region8
    $region5: #{tpu_custom_call.1} parent=1 // loop_body
      %s16 = ssub.s32 %s11, 1
      %s17 = ssub.s32 %s11, 2
      %s24 = sadd.s32 1, %s19
      %p25 = scmp.ge.s32.totalorder %s24, 1
      %s26 = scalar_select %p25, 0, %s24
      %s27 = sadd.s32 1, %s18
      %s28 = scalar_select %p25, %s27, %s18
      %p29 = scmp.ge.s32.totalorder %s28, 2
      %s30 = scalar_select %p29, 0, %s28
      %s32 = sadd.s32 %s31, 1
      %p35 = scmp.eq.s32.totalorder %s11, 1
      %p36 = scmp.ne.s32.totalorder %s31, %s33
      %p37 = scmp.eq.s32.totalorder %s11, 0
      %p38 = por %p36, %p37
      %p39 = scmp.ne.s32.totalorder %s31, %s33
      %p40 = scmp.eq.s32.totalorder %s16, 1
      %p41 = por %p39, %p40
      %p42 = scmp.ne.s32.totalorder %s33, %s34
      %p43 = scmp.eq.s32.totalorder %s16, 0
      %p44 = por %p42, %p43
      %p45 = scmp.ne.s32.totalorder %s33, %s34
      %p46 = scmp.eq.s32.totalorder %s17, 1
      %p47 = por %p45, %p46
      %p49 = scmp.ne.s32.totalorder %s34, %s48
      %p50 = scmp.eq.s32.totalorder %s17, 0
      %p51 = por %p49, %p50
      %s52 = ssub.s32 %s18, %s30
      %s53 = ssub.s32 %s19, %s26
      %s54 = sor.u32 %s52, %s53
      %p55 = scmp.eq.s32.totalorder %s54, 0
      %s57 = sadd.s32 %s56, 1
      %s58 = scalar_select %p55, %s56, %s57
      %p61 = pneg %p55
      %p62 = scmp.eq.s32.totalorder %s11, 1
      %p63 = por %p61, %p62
      %p64 = scmp.ne.s32.totalorder %s56, %s59
      %p65 = scmp.eq.s32.totalorder %s11, 0
      %p66 = por %p64, %p65
      %p67 = scmp.ne.s32.totalorder %s56, %s59
      %p68 = scmp.eq.s32.totalorder %s16, 1
      %p69 = por %p67, %p68
      %p70 = scmp.ne.s32.totalorder %s59, %s60
      %p71 = scmp.eq.s32.totalorder %s16, 0
      %p72 = por %p70, %p71
      %p73 = scmp.ne.s32.totalorder %s59, %s60
      %p74 = scmp.eq.s32.totalorder %s17, 1
      %p75 = por %p73, %p74
      %p77 = scmp.ne.s32.totalorder %s60, %s76
      %p78 = scmp.eq.s32.totalorder %s17, 0
      %p79 = por %p77, %p78
      %s80 = ssub.s32 %s18, %s30
      %p81 = scmp.eq.s32.totalorder %s80, 0
      %s83 = sadd.s32 %s82, 1
      %s84 = scalar_select %p81, %s82, %s83
      %p87 = pneg %p81
      %p88 = scmp.eq.s32.totalorder %s11, 1
      %p89 = por %p87, %p88
      %p90 = scmp.ne.s32.totalorder %s82, %s85
      %p91 = scmp.eq.s32.totalorder %s11, 0
      %p92 = por %p90, %p91
      %p93 = scmp.ne.s32.totalorder %s82, %s85
      %p94 = scmp.eq.s32.totalorder %s16, 1
      %p95 = por %p93, %p94
      %p96 = scmp.ne.s32.totalorder %s85, %s86
      %p97 = scmp.eq.s32.totalorder %s16, 0
      %p98 = por %p96, %p97
      %p99 = scmp.ne.s32.totalorder %s85, %s86
      %p100 = scmp.eq.s32.totalorder %s17, 1
      %p101 = por %p99, %p100
      %p103 = scmp.ne.s32.totalorder %s86, %s102
      %p104 = scmp.eq.s32.totalorder %s17, 0
      %p105 = por %p103, %p104
      %s106 = ssub.s32 %s18, %s30
      %p107 = scmp.eq.s32.totalorder %s106, 0
      %s109 = sadd.s32 %s108, 1
      %s110 = scalar_select %p107, %s108, %s109
      %p113 = pneg %p107
      %p114 = scmp.eq.s32.totalorder %s11, 1
      %p115 = por %p113, %p114
      %p116 = scmp.ne.s32.totalorder %s108, %s111
      %p117 = scmp.eq.s32.totalorder %s11, 0
      %p118 = por %p116, %p117
      %p119 = scmp.ne.s32.totalorder %s108, %s111
      %p120 = scmp.eq.s32.totalorder %s16, 1
      %p121 = por %p119, %p120
      %p122 = scmp.ne.s32.totalorder %s111, %s112
      %p123 = scmp.eq.s32.totalorder %s16, 0
      %p124 = por %p122, %p123
      %p125 = scmp.ne.s32.totalorder %s111, %s112
      %p126 = scmp.eq.s32.totalorder %s17, 1
      %p127 = por %p125, %p126
      %p129 = scmp.ne.s32.totalorder %s112, %s128
      %p130 = scmp.eq.s32.totalorder %s17, 0
      %p131 = por %p129, %p130
      %p132 = scmp.le.s32.totalorder 1, %s11
      %p133 = scmp.lt.s32.totalorder %s11, 3
      %p134 = pnand %p132, %p133
      %p135 = pneg %p134
      // Predicated region
      $region9: #{tpu_custom_call.1} parent=5 // pred_check
        _
      $region10: #{tpu_custom_call.1} parent=5 // pred_check_branch
        %137 = sbr.rel (%p134) target = $region12
      $region11: #{tpu_custom_call.1} parent=5 // pred_region
        %s138 = ssub.s32 %s11, 1
        // Predicated region
        $region13: #{tpu_custom_call.1} parent=11 // pred_check
          %p139 = pneg %p44
        $region14: #{tpu_custom_call.1} parent=11 // pred_check_branch
          %141 = sbr.rel (%p139) target = $region16
        $region15: #{tpu_custom_call.1} parent=11 // pred_region
          %s143 = ssub.s32 64, 64
          %144 = vsyncadd [#allocation3], %s143
          %s146 = sshll.u32 %s0, 4
          %s147 = int_to_ptr.vmem [resolvable:$true] %s146
          %149 = dma.vmem_to_smem %s147, 64, [#allocation2], [#allocation3]
        $region16: #{tpu_custom_call.1} parent=11 // pred_fallthru
          _
      $region12: #{tpu_custom_call.1} parent=5 // pred_fallthru
        _
      %p150 = scmp.lt.s32.totalorder %s11, 2
      // Predicated region
      $region17: #{tpu_custom_call.1} parent=5 // pred_check
        %p151 = pneg %p150
      $region18: #{tpu_custom_call.1} parent=5 // pred_check_branch
        %153 = sbr.rel (%p151) target = $region20
      $region19: #{tpu_custom_call.1} parent=5 // pred_region
        // Predicated region
        $region21: #{tpu_custom_call.1} parent=19 // pred_check
          %p154 = pneg %p66
        $region22: #{tpu_custom_call.1} parent=19 // pred_check_branch
          %156 = sbr.rel (%p154) target = $region24
        $region23: #{tpu_custom_call.1} parent=19 // pred_region
          %s157 = smul.u32 2, %s19
          %p158 = scmp.lt.s32.totalorder %s18, 1
          %s159 = scalar_select %p158, %s18, 1
          %p160 = scmp.lt.s32.totalorder %s157, 1
          %s161 = scalar_select %p160, %s157, 1
          %s162 = smul.addr %s159, 2
          %s163 = sadd.s32 %s161, %s162
          %s164 = smul.addr %s163, 4
          %s165 = scalar_lea.vmem %s1, %s164
          %s166 = smul.u32 2, %s19
        $region24: #{tpu_custom_call.1} parent=19 // pred_fallthru
          _
      $region20: #{tpu_custom_call.1} parent=5 // pred_fallthru
        _
      %p167 = scmp.le.s32.totalorder 1, %s11
      %p168 = scmp.lt.s32.totalorder %s11, 3
      %p169 = pnand %p167, %p168
      %p170 = pneg %p169
      // Predicated region
      $region25: #{tpu_custom_call.1} parent=5 // pred_check
        _
      $region26: #{tpu_custom_call.1} parent=5 // pred_check_branch
        %172 = sbr.rel (%p169) target = $region28
      $region27: #{tpu_custom_call.1} parent=5 // pred_region
        %s173 = ssub.s32 %s11, 1
        // Predicated region
        $region29: #{tpu_custom_call.1} parent=27 // pred_check
          %p174 = pneg %p44
        $region30: #{tpu_custom_call.1} parent=27 // pred_check_branch
          %176 = sbr.rel (%p174) target = $region32
        $region31: #{tpu_custom_call.1} parent=27 // pred_region
          %177 = dma.done [#allocation3], 64
        $region32: #{tpu_custom_call.1} parent=27 // pred_fallthru
          _
        %178 = sfence
        %p179 = pneg %p44
        %p180 = pneg %p41
        %s181 = smul.u32 2, %s21
        %p182 = scmp.lt.s32.totalorder %s20, 1
        %s183 = scalar_select %p182, %s20, 1
        %p184 = scmp.lt.s32.totalorder %s181, 1
        %s185 = scalar_select %p184, %s181, 1
        %s186 = smul.addr %s183, 2
        %s187 = sadd.s32 %s185, %s186
        %s188 = smul.addr %s187, 4
        %s189 = scalar_lea.vmem %s1, %s188
        %p190 = pneg %p72
        %p191 = pneg %p69
        %p192 = pneg %p98
        %p193 = pneg %p95
        %p194 = scmp.lt.s32.totalorder %s20, 1
        %s195 = scalar_select %p194, %s20, 1
        %s196 = smul.addr %s195, 2
        %s197 = smul.addr %s196, 4
        %s198 = scalar_lea.vmem %s2, %s197
        %p199 = pneg %p124
        %p200 = pneg %p121
        %p201 = scmp.lt.s32.totalorder %s20, 1
        %s202 = scalar_select %p201, %s20, 1
        %s203 = smul.addr %s202, 2
        %s204 = smul.addr %s203, 4
        %s205 = scalar_lea.vmem %s3, %s204
        %s206 = smul.u32 2, %s21
        %p207 = scmp.lt.s32.totalorder %s20, 1
        %s208 = scalar_select %p207, %s20, 1
        %p209 = scmp.lt.s32.totalorder %s206, 1
        %s210 = scalar_select %p209, %s206, 1
        %s211 = smul.addr %s208, 2
        %s212 = sadd.s32 %s210, %s211
        %s213 = smul.addr %s212, 4
        %s214 = scalar_lea.vmem %s1, %s213
        %s215 = smul.u32 2, %s21
        %p216 = scmp.lt.s32.totalorder %s20, 1
        %s217 = scalar_select %p216, %s20, 1
        %s218 = smul.addr %s217, 2
        %s219 = smul.addr %s218, 4
        %s220 = scalar_lea.vmem %s2, %s219
        %p221 = scmp.lt.s32.totalorder %s20, 1
        %s222 = scalar_select %p221, %s20, 1
        %s223 = smul.addr %s222, 2
        %s224 = smul.addr %s223, 4
        %s225 = scalar_lea.vmem %s3, %s224
        %p226 = scmp.eq.s32.totalorder %s21, 0
        // Predicated region
        $region33: #{tpu_custom_call.1} parent=27 // pred_check
          %p227 = pneg %p226
        $region34: #{tpu_custom_call.1} parent=27 // pred_check_branch
          %229 = sbr.rel (%p227) target = $region36
        $region35: #{tpu_custom_call.1} parent=27 // pred_region
          %230 = vst [vmem:[%s220] sm:$0x77] 0.0
          %231 = vst [vmem:[%s225] sm:$0x77] 0.0
        $region36: #{tpu_custom_call.1} parent=27 // pred_fallthru
          _
        %v232 = vld [vmem:[%s214] ss:$4 sm:$0x3]
        %s233 = scalar_lea.vmem %s214, 1
        %v234 = vld [vmem:[%s233] ss:$4 sm:$0x3]
        %s235 = scalar_lea.vmem %s214, 2
        %v236 = vld [vmem:[%s235] ss:$4 sm:$0x3]
        %s237 = sld [smem:[#allocation2]]
        %v238 = vstv %s237
        %v239 = vmul.f32 %v238, %v232
        %s240 = sld [smem:[#allocation2 + $0x1]]
        %v241 = vstv %s240
        %v242 = vmul.f32 %v241, %v234
        %v243 = vadd.f32 %v239, %v242
        %s244 = sld [smem:[#allocation2 + $0x2]]
        %v245 = vstv %s244
        %v246 = vmul.f32 %v245, %v236
        %v247 = vadd.f32 %v243, %v246
        %v248 = vld [vmem:[%s220] ss:$4 sm:$0x3]
        %v249 = vadd.f32 %v248, %v247
        %v250 = vlaneseq
        %vm251 = vcmp.ge.s32.totalorder %v250, 0
        %vm252 = vcmp.lt.s32.totalorder %v250, 256
        %vm253 = vmand %vm251, %vm252
        %254 = vst.msk [vmem:[%s220] ss:$4 sm:$0x3] %vm253, %v249
        %v255 = vld [vmem:[%s225] ss:$4 sm:$0x3]
        %v256 = vmul.f32 %v247, %v247
        %v257 = vadd.f32 %v255, %v256
        %258 = vst.msk [vmem:[%s225] ss:$4 sm:$0x3] %vm253, %v257
        %s259 = sld [smem:[#allocation2 + $0x80]]
        %v260 = vstv %s259
        %v261 = vmul.f32 %v260, %v232
        %s262 = sld [smem:[#allocation2 + $0x81]]
        %v263 = vstv %s262
        %v264 = vmul.f32 %v263, %v234
        %v265 = vadd.f32 %v261, %v264
        %s266 = sld [smem:[#allocation2 + $0x82]]
        %v267 = vstv %s266
        %v268 = vmul.f32 %v267, %v236
        %v269 = vadd.f32 %v265, %v268
        %s270 = scalar_lea.vmem %s220, 1
        %v271 = vld [vmem:[%s270] ss:$4 sm:$0x3]
        %v272 = vadd.f32 %v271, %v269
        %273 = vst.msk [vmem:[%s270] ss:$4 sm:$0x3] %vm253, %v272
        %s274 = scalar_lea.vmem %s225, 1
        %v275 = vld [vmem:[%s274] ss:$4 sm:$0x3]
        %v276 = vmul.f32 %v269, %v269
        %v277 = vadd.f32 %v275, %v276
        %278 = vst.msk [vmem:[%s274] ss:$4 sm:$0x3] %vm253, %v277
        %s279 = sld [smem:[#allocation2 + $0x100]]
        %v280 = vstv %s279
        %v281 = vmul.f32 %v280, %v232
        %s282 = sld [smem:[#allocation2 + $0x101]]
        %v283 = vstv %s282
        %v284 = vmul.f32 %v283, %v234
        %v285 = vadd.f32 %v281, %v284
        %s286 = sld [smem:[#allocation2 + $0x102]]
        %v287 = vstv %s286
        %v288 = vmul.f32 %v287, %v236
        %v289 = vadd.f32 %v285, %v288
        %s290 = scalar_lea.vmem %s220, 2
        %v291 = vld [vmem:[%s290] ss:$4 sm:$0x3]
        %v292 = vadd.f32 %v291, %v289
        %293 = vst.msk [vmem:[%s290] ss:$4 sm:$0x3] %vm253, %v292
        %s294 = scalar_lea.vmem %s225, 2
        %v295 = vld [vmem:[%s294] ss:$4 sm:$0x3]
        %v296 = vmul.f32 %v289, %v289
        %v297 = vadd.f32 %v295, %v296
        %298 = vst.msk [vmem:[%s294] ss:$4 sm:$0x3] %vm253, %v297
        %p299 = scmp.lt.s32.totalorder %s20, 1
        %s300 = scalar_select %p299, %s20, 1
        %s301 = smul.addr %s300, 2
        %s302 = smul.addr %s301, 4
        %s303 = scalar_lea.vmem %s2, %s302
        %p304 = scmp.lt.s32.totalorder %s20, 1
        %s305 = scalar_select %p304, %s20, 1
        %s306 = smul.addr %s305, 2
        %s307 = smul.addr %s306, 4
        %s308 = scalar_lea.vmem %s3, %s307
        // Predicated region
        $region37: #{tpu_custom_call.1} parent=27 // pred_check
          %p309 = pneg %p95
        $region38: #{tpu_custom_call.1} parent=27 // pred_check_branch
          %311 = sbr.rel (%p309) target = $region40
        $region39: #{tpu_custom_call.1} parent=27 // pred_region
          _
        $region40: #{tpu_custom_call.1} parent=27 // pred_fallthru
          _
        // Predicated region
        $region41: #{tpu_custom_call.1} parent=27 // pred_check
          %p312 = pneg %p121
        $region42: #{tpu_custom_call.1} parent=27 // pred_check_branch
          %314 = sbr.rel (%p312) target = $region44
        $region43: #{tpu_custom_call.1} parent=27 // pred_region
          _
        $region44: #{tpu_custom_call.1} parent=27 // pred_fallthru
          _
      $region28: #{tpu_custom_call.1} parent=5 // pred_fallthru
        _
      %p315 = scmp.le.s32.totalorder 2, %s11
      // Predicated region
      $region45: #{tpu_custom_call.1} parent=5 // pred_check
        %p316 = pneg %p315
      $region46: #{tpu_custom_call.1} parent=5 // pred_check_branch
        %318 = sbr.rel (%p316) target = $region48
      $region47: #{tpu_custom_call.1} parent=5 // pred_region
        %s319 = ssub.s32 %s11, 2
        // Predicated region
        $region49: #{tpu_custom_call.1} parent=47 // pred_check
          %p320 = pneg %p101
        $region50: #{tpu_custom_call.1} parent=47 // pred_check_branch
          %322 = sbr.rel (%p320) target = $region52
        $region51: #{tpu_custom_call.1} parent=47 // pred_region
          %p323 = scmp.lt.s32.totalorder %s22, 1
          %s324 = scalar_select %p323, %s22, 1
          %s325 = smul.addr %s324, 2
          %s326 = smul.addr %s325, 4
          %s327 = scalar_lea.vmem %s2, %s326
        $region52: #{tpu_custom_call.1} parent=47 // pred_fallthru
          _
        // Predicated region
        $region53: #{tpu_custom_call.1} parent=47 // pred_check
          %p328 = pneg %p127
        $region54: #{tpu_custom_call.1} parent=47 // pred_check_branch
          %330 = sbr.rel (%p328) target = $region56
        $region55: #{tpu_custom_call.1} parent=47 // pred_region
          %p331 = scmp.lt.s32.totalorder %s22, 1
          %s332 = scalar_select %p331, %s22, 1
          %s333 = smul.addr %s332, 2
          %s334 = smul.addr %s333, 4
          %s335 = scalar_lea.vmem %s3, %s334
        $region56: #{tpu_custom_call.1} parent=47 // pred_fallthru
          _
      $region48: #{tpu_custom_call.1} parent=5 // pred_fallthru
        _
    $region6: #{tpu_custom_call.1} parent=1 // loop_footer
      %s15 = sadd.s32 1, %s11
    $region7: #{tpu_custom_call.1} parent=1 // loop_footer_branch
      %10 = sbr.rel target = $region3
    $region8: #{tpu_custom_call.1} parent=1 // loop_exit
      _
    %336 = vsyncpa [#allocation3], 1
    %s337 = scalar_lea.sflag [#allocation3], 1
    %338 = vsyncpa %s337, 1

</llo_original>
